<compile_context>
chip_gen: v5e
topology: v5e:2x2
jax: 0.10.0
libtpu: 0.0.40
codegen_flags: <defaults>
</compile_context>

<pallas_src>
import functools
import math

import jax
import jax.numpy as jnp
from jax.experimental import pallas as pl
from jax.experimental.pallas import tpu as pltpu


def _round_up(v, m):
    return ((v + m - 1) // m) * m


def _learnable_sigmoid_kernel(x_ref, hs_ref, c_ref, o_ref):
    # x_ref : (TM, L) tile of the lane-dense repacked input (VMEM)
    # hs_ref: (1,  L) half-slope row, broadcast over sublanes (VMEM)
    # c_ref : (1,  1) beta/2 runtime scalar (SMEM)
    x = x_ref[...].astype(jnp.float32)
    hs = hs_ref[...].astype(jnp.float32)
    c = c_ref[0, 0]
    # sigmoid(z) = 0.5*tanh(z/2) + 0.5  =>  y = c * (tanh(hs*x) + 1), c = beta/2
    t = jnp.tanh(hs * x)                      # single EUP push per vreg
    o_ref[...] = (c * (t + 1.0)).astype(o_ref.dtype)


def _xla_sigmoid(x, slope, beta, out_dtype):
    z = slope.astype(jnp.float32) * x.astype(jnp.float32)
    return (beta * jax.nn.sigmoid(z)).astype(out_dtype)


def _num_tensorcores():
    """Best-effort TensorCore count (v7x: 2, v5e/v6e: 1). Perf-only hint."""
    try:
        info = pltpu.get_tpu_info()
        for name in ("num_tensorcores", "tensorcores_per_chip", "num_cores",
                     "core_count"):
            v = getattr(info, name, None)
            if isinstance(v, int) and v > 0:
                return v
    except Exception:
        pass
    try:
        v = getattr(jax.devices()[0], "num_cores", None)
        if isinstance(v, int) and v > 0:
            return v
    except Exception:
        pass
    return 1


def learnable_sigmoid_1d(
    x,
    slope,
    beta=1.0,
    *,
    target_tile_bytes=4 << 20,       # per-step IN+OUT byte budget
    min_pallas_elements=64 * 1024,   # below this, plain XLA is strictly better
):
    """y = beta * sigmoid(slope * x); slope broadcasts over x's last dim."""
    in_features = slope.shape[-1]
    assert x.shape[-1] == in_features, "last dim of x must equal in_features"

    out_dtype = jnp.promote_types(x.dtype, slope.dtype)  # match torch promotion
    orig_shape = x.shape
    total = x.size
    rows = total // in_features

    # Small-input fallback: one kernel launch + grid step costs more than the work.
    if total < min_pallas_elements:
        return _xla_sigmoid(x, slope, beta, out_dtype)

    # ---- Lane-dense repack -------------------------------------------------
    # Fold k consecutive rows into the lane axis so the kernel's last dim is a
    # multiple of 128 (full vregs, unmasked vst). The reshape of a contiguous
    # row-major array is free; the slope row just gets tiled k times.
    base_k = 128 // math.gcd(in_features, 128)
    k = base_k
    while (2 * k * in_features) <= 512 and rows % (2 * k) == 0:
        k *= 2                                     # grow lane width when free

    main_rows = (rows // k) * k                    # lane-dense bulk
    rem_rows = rows - main_rows                    # < k leftover rows

    if main_rows == 0:
        return _xla_sigmoid(x, slope, beta, out_dtype)

    L = k * in_features
    R = main_rows // k

    x_rows = x.reshape(rows, in_features)
    x_main = (x_rows if rem_rows == 0 else x_rows[:main_rows]).reshape(R, L)

    # Constant folding onto the tiny (1, L) row: half-slope for the tanh form.
    hs_row = (0.5 * slope.astype(jnp.float32)).reshape(1, in_features)
    if k > 1:
        hs_row = jnp.tile(hs_row, (1, k))
    # beta/2 as a runtime SMEM scalar: works for Python floats AND traced betas,
    # no recompile per beta value.
    c_half_beta = jnp.asarray(beta, jnp.float32).reshape(1, 1) * 0.5

    # ---- Row tiling: budget on input + output bytes per step ----------------
    in_b = jnp.dtype(x.dtype).itemsize
    out_b = jnp.dtype(out_dtype).itemsize
    bytes_per_row = L * (in_b + out_b)
    tm = max(8, (target_tile_bytes // bytes_per_row) // 8 * 8)
    tm = min(tm, _round_up(R, 8))

    # Only split a single-tile workload when there really are >= 2 TensorCores
    # (v7x); and when splitting, keep an even, balanced step count.
    n_cores = _num_tensorcores()
    steps = pl.cdiv(R, tm)
    if n_cores >= 2 and R > 8:
        steps = max(2, _round_up(steps, 2))
        tm = max(8, _round_up(pl.cdiv(R, steps), 8))
    grid = (pl.cdiv(R, tm),)   # ragged row tail handled by Pallas (no pad/slice)

    out_main = pl.pallas_call(
        _learnable_sigmoid_kernel,
        out_shape=jax.ShapeDtypeStruct((R, L), out_dtype),
        grid_spec=pltpu.PrefetchScalarGridSpec(
            num_scalar_prefetch=0,
            grid=grid,
            in_specs=[
                pl.BlockSpec((tm, L), lambda i: (i, 0)),
                pl.BlockSpec((1, L), lambda i: (0, 0)),
                pl.BlockSpec(memory_space=pltpu.MemorySpace.SMEM),
            ],
            out_specs=pl.BlockSpec((tm, L), lambda i: (i, 0)),
        ),
        compiler_params=pltpu.CompilerParams(
            dimension_semantics=("parallel",),
        ),
    )(x_main, hs_row, c_half_beta)

    if rem_rows:
        # Only the < k leftover rows go through XLA; the bulk stayed lane-dense.
        # The concat costs one extra pass over the output, but only on ragged
        # row counts, and beats running the whole tensor lane-sparse.
        y_rem = _xla_sigmoid(x_rows[main_rows:], slope, beta, out_dtype)
        y = jnp.concatenate(
            [out_main.reshape(main_rows, in_features), y_rem], axis=0)
        return y.reshape(orig_shape)

    return out_main.reshape(orig_shape)


if __name__ == "__main__":
    key = jax.random.PRNGKey(0)

    in_features = 32
    beta = 1.0

    # Deterministic parameter init (torch.ones + small perturbation so the
    # per-feature broadcast is actually exercised).
    slope = jnp.ones((in_features,), dtype=jnp.float32) \
        + 0.01 * jnp.arange(in_features, dtype=jnp.float32)

    def ref(x, b=beta):
        return b * jax.nn.sigmoid(slope * x)

    # 1) Tiny module-sized input (batch=2, seq=8, hidden=32): fallback path.
    x_small = jax.random.normal(key, (2, 8, in_features), dtype=jnp.float32)
    y_small = jax.block_until_ready(learnable_sigmoid_1d(x_small, slope, beta))
    assert y_small.shape == x_small.shape
    assert jnp.allclose(y_small, ref(x_small), atol=2e-6, rtol=2e-6)

    # 2) Pallas path, lane-dense repack (rows=112 divisible by the repack
    #    factor). Tanh formulation is exact -> tight tolerance.
    x_mid = jax.random.normal(jax.random.fold_in(key, 1),
                              (2, 56, in_features), dtype=jnp.float32)
    y_mid = jax.block_until_ready(
        learnable_sigmoid_1d(x_mid, slope, beta, min_pallas_elements=0))
    assert y_mid.shape == x_mid.shape
    assert jnp.allclose(y_mid, ref(x_mid), atol=2e-6, rtol=2e-6)

    # 3) rows NOT divisible by the repack factor: bulk runs lane-dense,
    #    leftover (<4) rows via the XLA tail path.
    x_odd = jax.random.normal(jax.random.fold_in(key, 2),
                              (3, 7, in_features), dtype=jnp.float32)
    y_odd = jax.block_until_ready(
        learnable_sigmoid_1d(x_odd, slope, beta, min_pallas_elements=0))
    assert y_odd.shape == x_odd.shape
    assert jnp.allclose(y_odd, ref(x_odd), atol=2e-6, rtol=2e-6)

    # 4) Non-unit beta (runtime SMEM scalar path).
    beta2 = 2.5
    x_b = jax.random.normal(jax.random.fold_in(key, 3),
                            (4, 28, in_features), dtype=jnp.float32)
    y_b = jax.block_until_ready(
        learnable_sigmoid_1d(x_b, slope, beta2, min_pallas_elements=0))
    assert y_b.shape == x_b.shape
    assert jnp.allclose(y_b, ref(x_b, beta2), atol=2e-6, rtol=2e-6)

    print("KERNEL_OK")
</pallas_src>

<mosaic_0001>
module attributes {stable_mosaic.version = 11 : i64} {
  func.func @_learnable_sigmoid_kernel(%arg0: i32, %arg1: memref<8x512xf32, #tpu.memory_space<vmem>>, %arg2: memref<1x512xf32, #tpu.memory_space<vmem>>, %arg3: memref<1x1xf32, #tpu.memory_space<smem>>, %arg4: memref<8x512xf32, #tpu.memory_space<vmem>>) attributes {dimension_semantics = [#tpu.dimension_semantics<parallel>], iteration_bounds = array<i64: 1>, scalar_prefetch = 0 : i64, scratch_operands = 0 : i64, tpu.core_type = #tpu.core_type<tc>, window_params = [{transform_indices = @transform_0, window_bounds = array<i64: 8, 512>}, {pipeline_mode = #tpu.pipeline_mode<synchronous>, transform_indices = @transform_1, window_bounds = array<i64: 1, 512>}, {transform_indices = @transform_2, window_bounds = array<i64: 1, 1>}, {transform_indices = @transform_3, window_bounds = array<i64: 8, 512>}]} {
    %c0 = arith.constant 0 : index
    %c0_0 = arith.constant 0 : index
    %0 = vector.load %arg1[%c0, %c0_0] : memref<8x512xf32, #tpu.memory_space<vmem>>, vector<8x512xf32>
    %c0_1 = arith.constant 0 : index
    %c0_2 = arith.constant 0 : index
    %1 = vector.load %arg2[%c0_1, %c0_2] : memref<1x512xf32, #tpu.memory_space<vmem>>, vector<1x512xf32>
    %c0_3 = arith.constant 0 : index
    %c0_4 = arith.constant 0 : index
    %2 = memref.load %arg3[%c0_3, %c0_4] : memref<1x1xf32, #tpu.memory_space<smem>>
    %3 = vector.broadcast %1 : vector<1x512xf32> to vector<8x512xf32>
    %4 = arith.mulf %3, %0 : vector<8x512xf32>
    %5 = math.tanh %4 : vector<8x512xf32>
    %cst = arith.constant 1.000000e+00 : f32
    %6 = vector.broadcast %cst : f32 to vector<8x512xf32>
    %7 = arith.addf %5, %6 : vector<8x512xf32>
    %8 = vector.broadcast %2 : f32 to vector<8x512xf32>
    %9 = arith.mulf %8, %7 : vector<8x512xf32>
    %c0_5 = arith.constant 0 : index
    %c0_6 = arith.constant 0 : index
    %10 = vector.load %arg4[%c0_5, %c0_6] : memref<8x512xf32, #tpu.memory_space<vmem>>, vector<8x512xf32>
    tpu.vector_store %arg4[%c0_5, %c0_6], %9 {strides = array<i32>} : memref<8x512xf32, #tpu.memory_space<vmem>>, vector<8x512xf32>,
    return
  }
  func.func @transform_0(%arg0: i32) -> (i32, i32) {
    %c0_i32 = arith.constant 0 : i32
    %c0_i32_0 = arith.constant 0 : i32
    return %arg0, %c0_i32 : i32, i32
  }
  func.func @transform_1(%arg0: i32) -> (i32, i32) {
    %c0_i32 = arith.constant 0 : i32
    %c0_i32_0 = arith.constant 0 : i32
    %c0_i32_1 = arith.constant 0 : i32
    return %c0_i32, %c0_i32_0 : i32, i32
  }
  func.func @transform_2(%arg0: i32) -> (i32, i32) {
    %c0_i32 = arith.constant 0 : i32
    %c0_i32_0 = arith.constant 0 : i32
    %c0_i32_1 = arith.constant 0 : i32
    return %c0_i32, %c0_i32_0 : i32, i32
  }
  func.func @transform_3(%arg0: i32) -> (i32, i32) {
    %c0_i32 = arith.constant 0 : i32
    %c0_i32_0 = arith.constant 0 : i32
    return %arg0, %c0_i32 : i32, i32
  }
}

</mosaic_0001>

<llo_original>
// kernel: tpu_custom_call.1
$region0: #{tpu_custom_call.1}
  #allocation0 [shape = 'u32[]', space=smem, size = 0x4, offset = 0x4, fixed_abs, tag = 'smem constant byte address 0x4 - core index']
  #allocation1 [shape = 'u32[72,128]{1,0:T(1,128)}', space=vmem, size = 0x9000, scoped, tag = 'internal scratch']
  #allocation2 [shape = 'f32[1,1]{1,0:T(1,128)S(6)}', space=smem, size = 0x200, scoped, tag = 'scoped memory for tpu_custom_call.1']
  %s0 = inlined_call_operand.hbm [shape: f32[7,512], index: 0, kind: input, shape index: {}]
  %s1 = inlined_call_operand.hbm [shape: f32[1,512], index: 1, kind: input, shape index: {}]
  %s2 = inlined_call_operand.<no memory space> [shape: f32[1,1], index: 2, kind: input, shape index: {}]
  %s3 = inlined_call_operand.hbm [shape: f32[7,512], index: 3, kind: output, shape index: {}]
  %s4 = sld [smem:[#allocation0]]
  $region30: #{tpu_custom_call.1} parent=0
    _
  %s6 = ssub.s32 1, %s4
  %s7 = scalar_select 0, %s6, %s4
  %8 = sst [smem:[#allocation2]] %s2
  $region1: #{tpu_custom_call.1} parent=0
    #allocation3 [shape = 'u8[16384]{0}', space=vmem, size = 0x4000, scoped, tag = 'input window, operand 0, single buffered']
    #allocation4 [shape = 's32[1]{0}', space=sflag, size = 0x4, scoped, tag = 'scoped memory for tpu_custom_call.1']
    #allocation5 [shape = 's32[1]{0}', space=sflag, size = 0x4, scoped, tag = 'scoped memory for tpu_custom_call.1']
    #allocation6 [shape = 'u8[2048]{0}', space=vmem, size = 0x800, scoped, tag = 'input window, operand 1, single buffered']
    #allocation7 [shape = 's32[1]{0}', space=sflag, size = 0x4, scoped, tag = 'scoped memory for tpu_custom_call.1']
    #allocation8 [shape = 'u8[16384]{0}', space=vmem, size = 0x4000, scoped, tag = 'output window, operand 0, single buffered']
    %9 = vsyncpa [#allocation4], 0
    %10 = vsyncpa [#allocation7], 0
    %11 = vsyncpa [#allocation5], 0
    // Predicated region
    $region2: #{tpu_custom_call.1} parent=1 // pred_check
      _
    $region3: #{tpu_custom_call.1} parent=1 // pred_check_branch
      %13 = sbr.rel (0) target = $region5
    $region4: #{tpu_custom_call.1} parent=1 // pred_region
      %15 = vsyncadd [#allocation4], 0
      %s17 = sshll.u32 %s0, 4
      %s18 = int_to_ptr.hbm [resolvable:$true] %s17
      %s19 = sshll.u32 [#allocation3], 4
      %s20 = int_to_ptr.vmem [resolvable:$true] %s19
      %22 = dma.hbm_to_vmem [thread:$0]  %s18, 512, %s20, [#allocation4]
    $region5: #{tpu_custom_call.1} parent=1 // pred_fallthru
      _
    // Predicated region
    $region6: #{tpu_custom_call.1} parent=1 // pred_check
      _
    $region7: #{tpu_custom_call.1} parent=1 // pred_check_branch
      %24 = sbr.rel (0) target = $region9
    $region8: #{tpu_custom_call.1} parent=1 // pred_region
      %26 = vsyncadd [#allocation7], 0
      %s28 = sshll.u32 %s1, 4
      %s29 = int_to_ptr.hbm [resolvable:$true] %s28
      %s30 = sshll.u32 [#allocation6], 4
      %s31 = int_to_ptr.vmem [resolvable:$true] %s30
      %33 = dma.hbm_to_vmem [thread:$0]  %s29, 64, %s31, [#allocation7]
    $region9: #{tpu_custom_call.1} parent=1 // pred_fallthru
      _
    // Predicated region
    $region10: #{tpu_custom_call.1} parent=1 // pred_check
      _
    $region11: #{tpu_custom_call.1} parent=1 // pred_check_branch
      %35 = sbr.rel (0) target = $region13
    $region12: #{tpu_custom_call.1} parent=1 // pred_region
      _
    $region13: #{tpu_custom_call.1} parent=1 // pred_fallthru
      _
    // Predicated region
    $region14: #{tpu_custom_call.1} parent=1 // pred_check
      _
    $region15: #{tpu_custom_call.1} parent=1 // pred_check_branch
      %37 = sbr.rel (0) target = $region17
    $region16: #{tpu_custom_call.1} parent=1 // pred_region
      %39 = dma.done [#allocation4], 512
    $region17: #{tpu_custom_call.1} parent=1 // pred_fallthru
      _
    // Predicated region
    $region18: #{tpu_custom_call.1} parent=1 // pred_check
      _
    $region19: #{tpu_custom_call.1} parent=1 // pred_check_branch
      %41 = sbr.rel (0) target = $region21
    $region20: #{tpu_custom_call.1} parent=1 // pred_region
      %43 = dma.done [#allocation7], 64
    $region21: #{tpu_custom_call.1} parent=1 // pred_fallthru
      _
    %v44 = vld [vmem:[#allocation3] sm:$0xff]
    %v45 = vld [vmem:[#allocation3 + $0x8] sm:$0xff]
    %v46 = vld [vmem:[#allocation3 + $0x10] sm:$0xff]
    %v47 = vld [vmem:[#allocation3 + $0x18] sm:$0xff]
    %v48 = vld [vmem:[#allocation6] sm:$0xf]
    %s49 = sld [smem:[#allocation2]]
    %v51 = vperm.slane %v48, 0
    %v52 = vperm.slane %v48, 1
    %v53 = vperm.slane %v48, 2
    %v54 = vperm.slane %v48, 3
    %v59 = vmul.f32 %v51, %v44
    %v60 = vmul.f32 %v52, %v45
    %v61 = vmul.f32 %v53, %v46
    %v62 = vmul.f32 %v54, %v47
    %v63 = vtanh.pop %v59
    %v64 = vtanh.pop %v60
    %v65 = vtanh.pop %v61
    %v66 = vtanh.pop %v62
    %v67 = vadd.f32 %v63, 1.0
    %v68 = vadd.f32 %v64, 1.0
    %v69 = vadd.f32 %v65, 1.0
    %v70 = vadd.f32 %v66, 1.0
    %v71 = vstv %s49
    %v72 = vmul.f32 %v71, %v67
    %v73 = vmul.f32 %v71, %v68
    %v74 = vmul.f32 %v71, %v69
    %v75 = vmul.f32 %v71, %v70
    %76 = vst [vmem:[#allocation8] sm:$0xff] %v72
    %77 = vst [vmem:[#allocation8 + $0x8] sm:$0xff] %v73
    %78 = vst [vmem:[#allocation8 + $0x10] sm:$0xff] %v74
    %79 = vst [vmem:[#allocation8 + $0x18] sm:$0xff] %v75
    // Predicated region
    $region22: #{tpu_custom_call.1} parent=1 // pred_check
      _
    $region23: #{tpu_custom_call.1} parent=1 // pred_check_branch
      %81 = sbr.rel (0) target = $region25
    $region24: #{tpu_custom_call.1} parent=1 // pred_region
      %83 = vsyncadd [#allocation5], 0
      %s85 = sshll.u32 [#allocation8], 4
      %s86 = int_to_ptr.vmem [resolvable:$true] %s85
      %s87 = sshll.u32 %s3, 4
      %s88 = int_to_ptr.hbm [resolvable:$true] %s87
      %90 = dma.vmem_to_hbm [thread:$0]  %s86, 512, %s88, [#allocation5]
    $region25: #{tpu_custom_call.1} parent=1 // pred_fallthru
      _
    // Predicated region
    $region26: #{tpu_custom_call.1} parent=1 // pred_check
      _
    $region27: #{tpu_custom_call.1} parent=1 // pred_check_branch
      %92 = sbr.rel (0) target = $region29
    $region28: #{tpu_custom_call.1} parent=1 // pred_region
      %94 = dma.done [#allocation5], 512
    $region29: #{tpu_custom_call.1} parent=1 // pred_fallthru
      _
    %95 = vsyncpa [#allocation4], 1
    %96 = vsyncpa [#allocation7], 1
    %97 = vsyncpa [#allocation5], 1

</llo_original>
